<compile_context>
chip_gen: v5e
topology: v5e:2x2
jax: 0.10.0
libtpu: 0.0.40
codegen_flags: <defaults>
</compile_context>

<pallas_src>
import functools

import jax
import jax.numpy as jnp
from jax import lax
from jax.experimental import pallas as pl
from jax.experimental.pallas import tpu as pltpu


def _round_up(a, b):
    return (a + b - 1) // b * b


_NT_DIMS = (((1,), (1,)), ((), ()))  # contract last dim of x tile and y tile

_VMEM_BUDGET_BYTES = 40 << 20   # conservative: fits v7x (64 MiB/TC) with headroom
_VMEM_LIMIT_CAP = 48 << 20


def _rbf_kernel_fused(x_ref, y_ref, o_ref, *, g2, c):
    """Single-pass kernel: full (padded) D is resident, no reduction grid axis."""
    z = lax.dot_general(
        x_ref[...], y_ref[...],
        dimension_numbers=_NT_DIMS,
        preferred_element_type=jnp.float32,
    )
    o_ref[...] = jnp.exp(c + g2 * z).astype(o_ref.dtype)


def _rbf_kernel_ksplit_f32out(x_ref, y_ref, o_ref, *, g2, c):
    """K-split kernel, f32 output: accumulate directly into the resident o_ref."""
    k = pl.program_id(2)
    z = lax.dot_general(
        x_ref[...], y_ref[...],
        dimension_numbers=_NT_DIMS,
        preferred_element_type=jnp.float32,
    )

    @pl.when(k == 0)
    def _():
        o_ref[...] = z            # first partial product: no zero-fill + add

    @pl.when(k > 0)
    def _():
        o_ref[...] = o_ref[...] + z

    @pl.when(k == pl.num_programs(2) - 1)
    def _():
        o_ref[...] = jnp.exp(c + g2 * o_ref[...])


def _rbf_kernel_ksplit_acc(x_ref, y_ref, o_ref, acc_ref, *, g2, c):
    """K-split kernel for non-f32 outputs: f32 accumulator scratch in VMEM."""
    k = pl.program_id(2)
    z = lax.dot_general(
        x_ref[...], y_ref[...],
        dimension_numbers=_NT_DIMS,
        preferred_element_type=jnp.float32,
    )

    @pl.when(k == 0)
    def _():
        acc_ref[...] = z

    @pl.when(k > 0)
    def _():
        acc_ref[...] = acc_ref[...] + z

    @pl.when(k == pl.num_programs(2) - 1)
    def _():
        o_ref[...] = jnp.exp(c + g2 * acc_ref[...]).astype(o_ref.dtype)


def rbf_sphere(x, y, sigma, *, tm=512, tn=512, tk=512, d_resident_max=3072,
               mxu_dtype=jnp.bfloat16, out_dtype=None):
    """Compute exp(-gamma^2 * (1 - x @ y.T)) with gamma = 1/sigma.

    mxu_dtype: dtype fed to the MXU (default bfloat16, f32 accumulation).
               Pass None to keep the input dtype (exact path).
    """
    gamma = 1.0 / sigma
    g2 = float(gamma * gamma)
    c = -g2

    N, D = x.shape
    M, Dy = y.shape
    assert D == Dy, "feature dims must match"

    in_dtype = x.dtype
    if out_dtype is None:
        out_dtype = in_dtype
    op_dtype = jnp.dtype(in_dtype if mxu_dtype is None else mxu_dtype)
    bytes_op = op_dtype.itemsize
    out_bytes = jnp.dtype(out_dtype).itemsize

    # Sub-32-bit operands pack 2 rows per sublane: use a 16-row minimum tile.
    sub_min = 16 if bytes_op < 4 else 8

    # Effective tile sizes (sublane / lane aligned).  N and M are NOT padded:
    # pl.cdiv grids + Pallas edge blocks handle ragged shapes (garbage in the
    # OOB part of partial input blocks only feeds OOB output rows/cols, which
    # are masked on store).
    tm_eff = min(tm, _round_up(N, sub_min))
    tn_eff = min(tn, _round_up(M, 128))

    # Choose fused (D resident) vs k-split based on D and the VMEM footprint.
    D_pad_fused = _round_up(D, 128)
    footprint_fused = (2 * (tm_eff + tn_eff) * D_pad_fused * bytes_op
                       + 2 * tm_eff * tn_eff * out_bytes)
    split_k = (D > d_resident_max) or (footprint_fused > _VMEM_BUDGET_BYTES)

    if split_k:
        tk_eff = min(tk, _round_up(D, 128))
        # The contraction dim must be padded to a multiple of tk_eff so no
        # grid step sees garbage in the reduction axis.
        D_pad = _round_up(D, tk_eff)
    else:
        D_pad = D_pad_fused
        tk_eff = D_pad

    # Only the contraction dim is zero-padded (zeros don't change x @ y.T).
    if mxu_dtype is not None and x.dtype != op_dtype:
        x = x.astype(op_dtype)
        y = y.astype(op_dtype)
    if D_pad != D:
        x = jnp.pad(x, ((0, 0), (0, D_pad - D)))
        y = jnp.pad(y, ((0, 0), (0, D_pad - D)))

    grid_m = pl.cdiv(N, tm_eff)
    grid_n = pl.cdiv(M, tn_eff)

    # v7x has 2 TensorCores sharded over the "parallel" axes: make sure the
    # parallel grid has >= 2 blocks when the problem allows it.
    if grid_m * grid_n == 1:
        if M > 128:
            tn_eff = _round_up(-(-M // 2), 128)
            grid_n = pl.cdiv(M, tn_eff)
        elif N > sub_min:
            tm_eff = _round_up(-(-N // 2), sub_min)
            grid_m = pl.cdiv(N, tm_eff)

    use_acc_scratch = split_k and jnp.dtype(out_dtype) != jnp.dtype(jnp.float32)

    # Double-buffered VMEM footprint for the chosen configuration.
    footprint = (2 * (tm_eff + tn_eff) * tk_eff * bytes_op
                 + 2 * tm_eff * tn_eff * out_bytes
                 + (tm_eff * tn_eff * 4 if use_acc_scratch else 0))
    vmem_limit = int(min(footprint + (16 << 20), _VMEM_LIMIT_CAP))

    # Advisory cost estimate (accounts for operand re-streaming across the grid).
    grid_k = D_pad // tk_eff if split_k else 1
    x_passes = grid_n if split_k else 1     # fused: x block depends only on i
    y_passes = grid_m                       # y re-streamed once per row of tiles
    cost = pl.CostEstimate(
        flops=2 * N * M * D_pad,
        transcendentals=N * M,
        bytes_accessed=int(x_passes * N * D_pad * bytes_op
                           + y_passes * M * D_pad * bytes_op
                           + N * M * out_bytes),
    )

    out_shape = jax.ShapeDtypeStruct((N, M), out_dtype)

    if not split_k:
        kernel = functools.partial(_rbf_kernel_fused, g2=g2, c=c)
        out = pl.pallas_call(
            kernel,
            out_shape=out_shape,
            grid_spec=pltpu.PrefetchScalarGridSpec(
                num_scalar_prefetch=0,
                grid=(grid_m, grid_n),
                in_specs=[
                    pl.BlockSpec((tm_eff, D_pad), lambda i, j: (i, 0)),  # x
                    pl.BlockSpec((tn_eff, D_pad), lambda i, j: (j, 0)),  # y
                ],
                out_specs=pl.BlockSpec((tm_eff, tn_eff), lambda i, j: (i, j)),
            ),
            compiler_params=pltpu.CompilerParams(
                dimension_semantics=("parallel", "parallel"),
                vmem_limit_bytes=vmem_limit,
            ),
            cost_estimate=cost,
        )(x, y)
    else:
        if use_acc_scratch:
            kernel = functools.partial(_rbf_kernel_ksplit_acc, g2=g2, c=c)
            scratch_shapes = [pltpu.VMEM((tm_eff, tn_eff), jnp.float32)]
        else:
            kernel = functools.partial(_rbf_kernel_ksplit_f32out, g2=g2, c=c)
            scratch_shapes = []
        out = pl.pallas_call(
            kernel,
            out_shape=out_shape,
            grid_spec=pltpu.PrefetchScalarGridSpec(
                num_scalar_prefetch=0,
                grid=(grid_m, grid_n, grid_k),
                in_specs=[
                    pl.BlockSpec((tm_eff, tk_eff), lambda i, j, k: (i, k)),  # x
                    pl.BlockSpec((tn_eff, tk_eff), lambda i, j, k: (j, k)),  # y
                ],
                out_specs=pl.BlockSpec((tm_eff, tn_eff), lambda i, j, k: (i, j)),
                scratch_shapes=scratch_shapes,
            ),
            compiler_params=pltpu.CompilerParams(
                dimension_semantics=("parallel", "parallel", "arbitrary"),
                vmem_limit_bytes=vmem_limit,
            ),
            cost_estimate=cost,
        )(x, y)

    return out


if __name__ == "__main__":
    # RBFSphere.__init__ only takes sigma (no learned parameters).
    sigma = 0.5
    gamma = 1.0 / sigma

    key = jax.random.PRNGKey(0)
    kx, ky = jax.random.split(key)
    N, M, D = 128, 128, 256
    x = jax.random.normal(kx, (N, D), dtype=jnp.float32)
    y = jax.random.normal(ky, (M, D), dtype=jnp.float32)
    # Rows normalized to the unit sphere (matches the "sphere" semantics).
    x = x / jnp.linalg.norm(x, axis=-1, keepdims=True)
    y = y / jnp.linalg.norm(y, axis=-1, keepdims=True)

    ref = jnp.exp(-(gamma ** 2) * (1.0 - x @ y.T))

    # Default bf16-MXU path (f32 accumulation): ~1e-3 relative accuracy.
    gram = jax.block_until_ready(rbf_sphere(x, y, sigma))
    assert gram.shape == (N, M)
    assert jnp.allclose(gram, ref, atol=2e-2, rtol=2e-2), "bf16 path mismatch"

    # Exact f32-MXU path.
    gram_f32 = jax.block_until_ready(rbf_sphere(x, y, sigma, mxu_dtype=None))
    assert jnp.allclose(gram_f32, ref, atol=1e-5, rtol=1e-5), "f32 path mismatch"

    # Ragged shapes + forced k-split path (exercises edge blocks, D padding,
    # and the accumulate-into-o_ref reduction).
    N2, M2, D2 = 200, 300, 640
    kx2, ky2 = jax.random.split(jax.random.PRNGKey(1))
    x2 = jax.random.normal(kx2, (N2, D2), dtype=jnp.float32)
    y2 = jax.random.normal(ky2, (M2, D2), dtype=jnp.float32)
    x2 = x2 / jnp.linalg.norm(x2, axis=-1, keepdims=True)
    y2 = y2 / jnp.linalg.norm(y2, axis=-1, keepdims=True)
    ref2 = jnp.exp(-(gamma ** 2) * (1.0 - x2 @ y2.T))

    gram2 = jax.block_until_ready(
        rbf_sphere(x2, y2, sigma, tk=512, d_resident_max=256))
    assert gram2.shape == (N2, M2)
    assert jnp.allclose(gram2, ref2, atol=2e-2, rtol=2e-2), "k-split bf16 mismatch"

    gram3 = jax.block_until_ready(
        rbf_sphere(x2, y2, sigma, tk=512, d_resident_max=256, mxu_dtype=None))
    assert jnp.allclose(gram3, ref2, atol=1e-5, rtol=1e-5), "k-split f32 mismatch"

    print("KERNEL_OK")
</pallas_src>

<mosaic_0001>
module attributes {stable_mosaic.version = 11 : i64} {
  func.func @_rbf_kernel_fused(%arg0: i32, %arg1: i32, %arg2: memref<64x256xbf16, #tpu.memory_space<vmem>>, %arg3: memref<128x256xbf16, #tpu.memory_space<vmem>>, %arg4: memref<64x128xf32, #tpu.memory_space<vmem>>) attributes {dimension_semantics = [#tpu.dimension_semantics<parallel>, #tpu.dimension_semantics<parallel>], iteration_bounds = array<i64: 2, 1>, scalar_prefetch = 0 : i64, scratch_operands = 0 : i64, tpu.core_type = #tpu.core_type<tc>, window_params = [{transform_indices = @transform_0, window_bounds = array<i64: 64, 256>}, {transform_indices = @transform_1, window_bounds = array<i64: 128, 256>}, {transform_indices = @transform_2, window_bounds = array<i64: 64, 128>}]} {
    %c0 = arith.constant 0 : index
    %c0_0 = arith.constant 0 : index
    %0 = vector.load %arg2[%c0, %c0_0] : memref<64x256xbf16, #tpu.memory_space<vmem>>, vector<64x256xbf16>
    %c0_1 = arith.constant 0 : index
    %c0_2 = arith.constant 0 : index
    %1 = vector.load %arg3[%c0_1, %c0_2] : memref<128x256xbf16, #tpu.memory_space<vmem>>, vector<128x256xbf16>
    %cst = arith.constant dense<0.000000e+00> : vector<64x128xf32>
    %2 = tpu.matmul %0, %1, %cst {dimension_numbers = #tpu.dot_dimension_numbers<[1], [1], [0], [0], [0, 0, 1, 0], [], []>} : vector<64x256xbf16>, vector<128x256xbf16>, vector<64x128xf32> -> vector<64x128xf32>
    %cst_3 = arith.constant 4.000000e+00 : f32
    %3 = vector.broadcast %cst_3 : f32 to vector<64x128xf32>
    %4 = arith.mulf %3, %2 : vector<64x128xf32>
    %cst_4 = arith.constant -4.000000e+00 : f32
    %5 = vector.broadcast %cst_4 : f32 to vector<64x128xf32>
    %6 = arith.addf %5, %4 : vector<64x128xf32>
    %7 = math.exp %6 : vector<64x128xf32>
    %c0_5 = arith.constant 0 : index
    %c0_6 = arith.constant 0 : index
    %8 = vector.load %arg4[%c0_5, %c0_6] : memref<64x128xf32, #tpu.memory_space<vmem>>, vector<64x128xf32>
    tpu.vector_store %arg4[%c0_5, %c0_6], %7 {strides = array<i32>} : memref<64x128xf32, #tpu.memory_space<vmem>>, vector<64x128xf32>,
    return
  }
  func.func @transform_0(%arg0: i32, %arg1: i32) -> (i32, i32) {
    %c0_i32 = arith.constant 0 : i32
    %c0_i32_0 = arith.constant 0 : i32
    return %arg0, %c0_i32 : i32, i32
  }
  func.func @transform_1(%arg0: i32, %arg1: i32) -> (i32, i32) {
    %c0_i32 = arith.constant 0 : i32
    %c0_i32_0 = arith.constant 0 : i32
    return %arg1, %c0_i32 : i32, i32
  }
  func.func @transform_2(%arg0: i32, %arg1: i32) -> (i32, i32) {
    %c0_i32 = arith.constant 0 : i32
    return %arg0, %arg1 : i32, i32
  }
}

</mosaic_0001>

<llo_original>
// kernel: tpu_custom_call.1
$region0: #{tpu_custom_call.1}
  #allocation0 [shape = 'u32[]', space=smem, size = 0x4, offset = 0x4, fixed_abs, tag = 'smem constant byte address 0x4 - core index']
  #allocation1 [shape = 'u32[72,128]{1,0:T(1,128)}', space=vmem, size = 0x9000, scoped, tag = 'internal scratch']
  %s0 = inlined_call_operand.hbm [shape: bf16[128,256], index: 0, kind: input, shape index: {}]
  %s1 = inlined_call_operand.hbm [shape: bf16[128,256], index: 1, kind: input, shape index: {}]
  %s2 = inlined_call_operand.hbm [shape: f32[128,128], index: 2, kind: output, shape index: {}]
  %s3 = sld [smem:[#allocation0]]
  $region49: #{tpu_custom_call.1} parent=0
    _
  %s5 = ssub.s32 1, %s3
  %s6 = scalar_select 0, %s5, %s3
  $region1: #{tpu_custom_call.1} parent=0
    #allocation2 [shape = 'u8[65536]{0}', space=vmem, size = 0x10000, scoped, tag = 'input window, operand 0']
    #allocation3 [shape = 's32[2]{0}', space=sflag, size = 0x8, scoped, tag = 'scoped memory for tpu_custom_call.1']
    #allocation4 [shape = 's32[2]{0}', space=sflag, size = 0x8, scoped, tag = 'scoped memory for tpu_custom_call.1']
    #allocation5 [shape = 'u8[65536]{0}', space=vmem, size = 0x10000, scoped, tag = 'input window, operand 1, single buffered']
    #allocation6 [shape = 's32[1]{0}', space=sflag, size = 0x4, scoped, tag = 'scoped memory for tpu_custom_call.1']
    #allocation7 [shape = 'u8[65536]{0}', space=vmem, size = 0x10000, scoped, tag = 'output window, operand 0']
    %7 = vsyncpa [#allocation3], 0
    %s8 = scalar_lea.sflag [#allocation3], 1
    %9 = vsyncpa %s8, 0
    %10 = vsyncpa [#allocation6], 0
    %11 = vsyncpa [#allocation4], 0
    %s12 = scalar_lea.sflag [#allocation4], 1
    %13 = vsyncpa %s12, 0
    loop: start=0, step=1, limit=4
    $region2: #{tpu_custom_call.1} parent=1 // loop_pre_header
      _
    $region3: #{tpu_custom_call.1} parent=1 // loop_header
      %s15 = sphi 0, %s19
      %p16 = scmp.ge.s32.totalorder %s15, 4
      %s22 = sphi 0, %s34
      %s23 = sphi 0, %s30
      %s24 = sphi 0, %s22
      %s25 = sphi 0, %s23
      %s26 = sphi 0, %s24
      %s27 = sphi 0, %s25
      %s37 = sphi 0, %s39
      %s40 = sphi 0, %s37
      %s41 = sphi 0, %s40
      %s57 = sphi 0, %s41
      %s63 = sphi 0, %s65
      %s66 = sphi 0, %s63
      %s67 = sphi 0, %s66
      %s83 = sphi 0, %s67
      %s91 = sphi 0, %s93
      %s94 = sphi 0, %s91
      %s95 = sphi 0, %s94
      %s111 = sphi 0, %s95
    $region4: #{tpu_custom_call.1} parent=1 // loop_header_branch
      %18 = sbr.rel (%p16) target = $region8
    $region5: #{tpu_custom_call.1} parent=1 // loop_body
      %s20 = ssub.s32 %s15, 1
      %s21 = ssub.s32 %s15, 2
      %s28 = sadd.s32 1, %s23
      %p29 = scmp.ge.s32.totalorder %s28, 1
      %s30 = scalar_select %p29, 0, %s28
      %s31 = sadd.s32 1, %s22
      %s32 = scalar_select %p29, %s31, %s22
      %p33 = scmp.ge.s32.totalorder %s32, 2
      %s34 = scalar_select %p33, 0, %s32
      %s35 = ssub.s32 %s22, %s34
      %p36 = scmp.eq.s32.totalorder %s35, 0
      %s38 = sadd.s32 %s37, 1
      %s39 = scalar_select %p36, %s37, %s38
      %p42 = pneg %p36
      %p43 = scmp.eq.s32.totalorder %s15, 1
      %p44 = por %p42, %p43
      %p45 = scmp.ne.s32.totalorder %s37, %s40
      %p46 = scmp.eq.s32.totalorder %s15, 0
      %p47 = por %p45, %p46
      %p48 = scmp.ne.s32.totalorder %s37, %s40
      %p49 = scmp.eq.s32.totalorder %s20, 1
      %p50 = por %p48, %p49
      %p51 = scmp.ne.s32.totalorder %s40, %s41
      %p52 = scmp.eq.s32.totalorder %s20, 0
      %p53 = por %p51, %p52
      %p54 = scmp.ne.s32.totalorder %s40, %s41
      %p55 = scmp.eq.s32.totalorder %s21, 1
      %p56 = por %p54, %p55
      %p58 = scmp.ne.s32.totalorder %s41, %s57
      %p59 = scmp.eq.s32.totalorder %s21, 0
      %p60 = por %p58, %p59
      %s61 = ssub.s32 %s23, %s30
      %p62 = scmp.eq.s32.totalorder %s61, 0
      %s64 = sadd.s32 %s63, 1
      %s65 = scalar_select %p62, %s63, %s64
      %p68 = pneg %p62
      %p69 = scmp.eq.s32.totalorder %s15, 1
      %p70 = por %p68, %p69
      %p71 = scmp.ne.s32.totalorder %s63, %s66
      %p72 = scmp.eq.s32.totalorder %s15, 0
      %p73 = por %p71, %p72
      %p74 = scmp.ne.s32.totalorder %s63, %s66
      %p75 = scmp.eq.s32.totalorder %s20, 1
      %p76 = por %p74, %p75
      %p77 = scmp.ne.s32.totalorder %s66, %s67
      %p78 = scmp.eq.s32.totalorder %s20, 0
      %p79 = por %p77, %p78
      %p80 = scmp.ne.s32.totalorder %s66, %s67
      %p81 = scmp.eq.s32.totalorder %s21, 1
      %p82 = por %p80, %p81
      %p84 = scmp.ne.s32.totalorder %s67, %s83
      %p85 = scmp.eq.s32.totalorder %s21, 0
      %p86 = por %p84, %p85
      %s87 = ssub.s32 %s22, %s34
      %s88 = ssub.s32 %s23, %s30
      %s89 = sor.u32 %s87, %s88
      %p90 = scmp.eq.s32.totalorder %s89, 0
      %s92 = sadd.s32 %s91, 1
      %s93 = scalar_select %p90, %s91, %s92
      %p96 = pneg %p90
      %p97 = scmp.eq.s32.totalorder %s15, 1
      %p98 = por %p96, %p97
      %p99 = scmp.ne.s32.totalorder %s91, %s94
      %p100 = scmp.eq.s32.totalorder %s15, 0
      %p101 = por %p99, %p100
      %p102 = scmp.ne.s32.totalorder %s91, %s94
      %p103 = scmp.eq.s32.totalorder %s20, 1
      %p104 = por %p102, %p103
      %p105 = scmp.ne.s32.totalorder %s94, %s95
      %p106 = scmp.eq.s32.totalorder %s20, 0
      %p107 = por %p105, %p106
      %p108 = scmp.ne.s32.totalorder %s94, %s95
      %p109 = scmp.eq.s32.totalorder %s21, 1
      %p110 = por %p108, %p109
      %p112 = scmp.ne.s32.totalorder %s95, %s111
      %p113 = scmp.eq.s32.totalorder %s21, 0
      %p114 = por %p112, %p113
      %p115 = scmp.le.s32.totalorder 1, %s15
      %p116 = scmp.lt.s32.totalorder %s15, 3
      %p117 = pnand %p115, %p116
      %p118 = pneg %p117
      // Predicated region
      $region9: #{tpu_custom_call.1} parent=5 // pred_check
        _
      $region10: #{tpu_custom_call.1} parent=5 // pred_check_branch
        %120 = sbr.rel (%p117) target = $region12
      $region11: #{tpu_custom_call.1} parent=5 // pred_region
        %s121 = ssub.s32 %s15, 1
        // Predicated region
        $region13: #{tpu_custom_call.1} parent=11 // pred_check
          %p122 = pneg %p79
        $region14: #{tpu_custom_call.1} parent=11 // pred_check_branch
          %124 = sbr.rel (%p122) target = $region16
        $region15: #{tpu_custom_call.1} parent=11 // pred_region
          %s125 = smul.u32 16, %s25
          %127 = vsyncadd [#allocation6], 0
          %s128 = smul.addr %s125, 2
          %s129 = smul.addr %s128, 4
          %s130 = scalar_lea.hbm %s1, %s129
          %s131 = sshll.u32 %s130, 4
          %s132 = int_to_ptr.hbm [resolvable:$true] %s131
          %s133 = sshll.u32 [#allocation5], 4
          %s134 = int_to_ptr.vmem [resolvable:$true] %s133
          %139 = dma.hbm_to_vmem [thread:$0]  %s132, 2048, %s134, [#allocation6], 128, 128, 8
        $region16: #{tpu_custom_call.1} parent=11 // pred_fallthru
          _
      $region12: #{tpu_custom_call.1} parent=5 // pred_fallthru
        _
      %p140 = scmp.lt.s32.totalorder %s15, 2
      // Predicated region
      $region17: #{tpu_custom_call.1} parent=5 // pred_check
        %p141 = pneg %p140
      $region18: #{tpu_custom_call.1} parent=5 // pred_check_branch
        %143 = sbr.rel (%p141) target = $region20
      $region19: #{tpu_custom_call.1} parent=5 // pred_region
        // Predicated region
        $region21: #{tpu_custom_call.1} parent=19 // pred_check
          %p144 = pneg %p47
        $region22: #{tpu_custom_call.1} parent=19 // pred_check_branch
          %146 = sbr.rel (%p144) target = $region24
        $region23: #{tpu_custom_call.1} parent=19 // pred_region
          %s147 = sand.u32 %s37, 1
          %s148 = scalar_lea.sflag [#allocation3], %s147
          %s149 = sand.u32 %s37, 1
          %s150 = smul.addr %s149, 64
          %s151 = scalar_lea.vmem [#allocation2], %s150
          %s152 = smul.u32 8, %s22
          %154 = vsyncadd %s148, 0
          %s155 = smul.addr %s152, 2
          %s156 = smul.addr %s155, 4
          %s157 = scalar_lea.hbm %s0, %s156
          %s158 = sshll.u32 %s157, 4
          %s159 = int_to_ptr.hbm [resolvable:$true] %s158
          %s160 = sshll.u32 %s151, 4
          %s161 = int_to_ptr.vmem [resolvable:$true] %s160
          %166 = dma.hbm_to_vmem [thread:$0]  %s159, 1024, %s161, %s148, 128, 128, 8
        $region24: #{tpu_custom_call.1} parent=19 // pred_fallthru
          _
      $region20: #{tpu_custom_call.1} parent=5 // pred_fallthru
        _
      %p167 = scmp.le.s32.totalorder 1, %s15
      %p168 = scmp.lt.s32.totalorder %s15, 3
      %p169 = pnand %p167, %p168
      %p170 = pneg %p169
      // Predicated region
      $region25: #{tpu_custom_call.1} parent=5 // pred_check
        _
      $region26: #{tpu_custom_call.1} parent=5 // pred_check_branch
        %172 = sbr.rel (%p169) target = $region28
      $region27: #{tpu_custom_call.1} parent=5 // pred_region
        %s173 = ssub.s32 %s15, 1
        %s174 = sand.u32 %s40, 1
        %s175 = scalar_lea.sflag [#allocation3], %s174
        %s176 = sand.u32 %s40, 1
        %s177 = smul.addr %s176, 64
        %s178 = scalar_lea.vmem [#allocation2], %s177
        // Predicated region
        $region29: #{tpu_custom_call.1} parent=27 // pred_check
          %p179 = pneg %p53
        $region30: #{tpu_custom_call.1} parent=27 // pred_check_branch
          %181 = sbr.rel (%p179) target = $region32
        $region31: #{tpu_custom_call.1} parent=27 // pred_region
          %183 = dma.done %s175, 1024
        $region32: #{tpu_custom_call.1} parent=27 // pred_fallthru
          _
        // Predicated region
        $region33: #{tpu_custom_call.1} parent=27 // pred_check
          %p184 = pneg %p79
        $region34: #{tpu_custom_call.1} parent=27 // pred_check_branch
          %186 = sbr.rel (%p184) target = $region36
        $region35: #{tpu_custom_call.1} parent=27 // pred_region
          %188 = dma.done [#allocation6], 2048
        $region36: #{tpu_custom_call.1} parent=27 // pred_fallthru
          _
        %s189 = sand.u32 %s40, 1
        %s190 = scalar_lea.sflag [#allocation3], %s189
        %s191 = sand.u32 %s40, 1
        %s192 = smul.addr %s191, 64
        %s193 = scalar_lea.vmem [#allocation2], %s192
        %p194 = pneg %p53
        %p195 = pneg %p50
        %p196 = pneg %p79
        %p197 = pneg %p76
        %p198 = pneg %p107
        %p199 = pneg %p104
        %s200 = sand.u32 %s94, 1
        %s201 = scalar_lea.sflag [#allocation4], %s200
        %s202 = sand.u32 %s94, 1
        %s203 = smul.addr %s202, 64
        %s204 = scalar_lea.vmem [#allocation7], %s203
        %s205 = smul.u32 8, %s24
        %s206 = smul.u32 16, %s25
        %s207 = smul.u32 8, %s24
        %v208 = vld [vmem:[%s178] sm:$0xff]
        %v209 = vld [vmem:[%s178 + $0x8] sm:$0xff]
        %v210 = vld [vmem:[%s178 + $0x10] sm:$0xff]
        %v211 = vld [vmem:[%s178 + $0x18] sm:$0xff]
        %v212 = vld [vmem:[%s178 + $0x20] sm:$0xff]
        %v213 = vld [vmem:[%s178 + $0x28] sm:$0xff]
        %v214 = vld [vmem:[%s178 + $0x30] sm:$0xff]
        %v215 = vld [vmem:[%s178 + $0x38] sm:$0xff]
        %v216 = vld [vmem:[#allocation5] sm:$0xff]
        %v217 = vld [vmem:[#allocation5 + $0x8] sm:$0xff]
        %v218 = vld [vmem:[#allocation5 + $0x10] sm:$0xff]
        %v219 = vld [vmem:[#allocation5 + $0x18] sm:$0xff]
        %v220 = vld [vmem:[#allocation5 + $0x20] sm:$0xff]
        %v221 = vld [vmem:[#allocation5 + $0x28] sm:$0xff]
        %v222 = vld [vmem:[#allocation5 + $0x30] sm:$0xff]
        %v223 = vld [vmem:[#allocation5 + $0x38] sm:$0xff]
        %v224 = vld [vmem:[#allocation5 + $0x40] sm:$0xff]
        %v225 = vld [vmem:[#allocation5 + $0x48] sm:$0xff]
        %v226 = vld [vmem:[#allocation5 + $0x50] sm:$0xff]
        %v227 = vld [vmem:[#allocation5 + $0x58] sm:$0xff]
        %v228 = vld [vmem:[#allocation5 + $0x60] sm:$0xff]
        %v229 = vld [vmem:[#allocation5 + $0x68] sm:$0xff]
        %v230 = vld [vmem:[#allocation5 + $0x70] sm:$0xff]
        %v231 = vld [vmem:[#allocation5 + $0x78] sm:$0xff]
        %v240 = vunpack.c.l.b16 %v208
        %v241 = vunpack.c.h.b16 %v208
        %v242 = vunpack.c.l.b16 %v209
        %v243 = vunpack.c.h.b16 %v209
        %v244 = vunpack.c.l.b16 %v210
        %v245 = vunpack.c.h.b16 %v210
        %v246 = vunpack.c.l.b16 %v211
        %v247 = vunpack.c.h.b16 %v211
        %v248 = vunpack.c.l.b16 %v212
        %v249 = vunpack.c.h.b16 %v212
        %v250 = vunpack.c.l.b16 %v213
        %v251 = vunpack.c.h.b16 %v213
        %v252 = vunpack.c.l.b16 %v214
        %v253 = vunpack.c.h.b16 %v214
        %v254 = vunpack.c.l.b16 %v215
        %v255 = vunpack.c.h.b16 %v215
        %v256 = vpack.c.b16 %v242, %v240
        %v257 = vpack.c.b16 %v243, %v241
        %v258 = vpack.c.b16 %v246, %v244
        %v259 = vpack.c.b16 %v247, %v245
        %v260 = vpack.c.b16 %v250, %v248
        %v261 = vpack.c.b16 %v251, %v249
        %v262 = vpack.c.b16 %v254, %v252
        %v263 = vpack.c.b16 %v255, %v253
        %v288 = vunpack.c.l.b16 %v216
        %v289 = vunpack.c.h.b16 %v216
        %v290 = vunpack.c.l.b16 %v217
        %v291 = vunpack.c.h.b16 %v217
        %v292 = vunpack.c.l.b16 %v218
        %v293 = vunpack.c.h.b16 %v218
        %v294 = vunpack.c.l.b16 %v219
        %v295 = vunpack.c.h.b16 %v219
        %v296 = vunpack.c.l.b16 %v220
        %v297 = vunpack.c.h.b16 %v220
        %v298 = vunpack.c.l.b16 %v221
        %v299 = vunpack.c.h.b16 %v221
        %v300 = vunpack.c.l.b16 %v222
        %v301 = vunpack.c.h.b16 %v222
        %v302 = vunpack.c.l.b16 %v223
        %v303 = vunpack.c.h.b16 %v223
        %v304 = vunpack.c.l.b16 %v224
        %v305 = vunpack.c.h.b16 %v224
        %v306 = vunpack.c.l.b16 %v225
        %v307 = vunpack.c.h.b16 %v225
        %v308 = vunpack.c.l.b16 %v226
        %v309 = vunpack.c.h.b16 %v226
        %v310 = vunpack.c.l.b16 %v227
        %v311 = vunpack.c.h.b16 %v227
        %v312 = vunpack.c.l.b16 %v228
        %v313 = vunpack.c.h.b16 %v228
        %v314 = vunpack.c.l.b16 %v229
        %v315 = vunpack.c.h.b16 %v229
        %v316 = vunpack.c.l.b16 %v230
        %v317 = vunpack.c.h.b16 %v230
        %v318 = vunpack.c.l.b16 %v231
        %v319 = vunpack.c.h.b16 %v231
        %v320 = vpack.c.b16 %v290, %v288
        %v321 = vpack.c.b16 %v291, %v289
        %v322 = vpack.c.b16 %v294, %v292
        %v323 = vpack.c.b16 %v295, %v293
        %v324 = vpack.c.b16 %v298, %v296
        %v325 = vpack.c.b16 %v299, %v297
        %v326 = vpack.c.b16 %v302, %v300
        %v327 = vpack.c.b16 %v303, %v301
        %v328 = vpack.c.b16 %v306, %v304
        %v329 = vpack.c.b16 %v307, %v305
        %v330 = vpack.c.b16 %v310, %v308
        %v331 = vpack.c.b16 %v311, %v309
        %v332 = vpack.c.b16 %v314, %v312
        %v333 = vpack.c.b16 %v315, %v313
        %v334 = vpack.c.b16 %v318, %v316
        %v335 = vpack.c.b16 %v319, %v317
        %352 = vmatpush.bf16.xpose.msra.mxu0 %v334
        %353 = vmatpush.bf16.xpose.msra.mxu0 %v332
        %354 = vmatpush.bf16.xpose.msra.mxu0 %v330
        %355 = vmatpush.bf16.xpose.msra.mxu0 %v328
        %356 = vmatpush.bf16.xpose.msra.mxu0 %v326
        %357 = vmatpush.bf16.xpose.msra.mxu0 %v324
        %358 = vmatpush.bf16.xpose.msra.mxu0 %v322
        %359 = vmatpush.bf16.xpose.msra.mxu0 %v320
        %360 = vmatmul.bf16.gmra.mxu0 %v256
        %v361 = vpop.f32.mrf.mxu0
        %v362 = vadd.f32 0.0, %v361
        %v363 = vpop.f32.mrf.mxu0
        %v364 = vadd.f32 0.0, %v363
        %365 = vmatmul.bf16.gmra.mxu0 %v258
        %v366 = vpop.f32.mrf.mxu0
        %v367 = vadd.f32 0.0, %v366
        %v368 = vpop.f32.mrf.mxu0
        %v369 = vadd.f32 0.0, %v368
        %370 = vmatmul.bf16.gmra.mxu0 %v260
        %v371 = vpop.f32.mrf.mxu0
        %v372 = vadd.f32 0.0, %v371
        %v373 = vpop.f32.mrf.mxu0
        %v374 = vadd.f32 0.0, %v373
        %375 = vmatmul.bf16.gmra.mxu0 %v262
        %v376 = vpop.f32.mrf.mxu0
        %v377 = vadd.f32 0.0, %v376
        %v378 = vpop.f32.mrf.mxu0
        %v379 = vadd.f32 0.0, %v378
        %380 = vdwg.mxu0
        %381 = vmatpush.bf16.xpose.msra.mxu0 %v335
        %382 = vmatpush.bf16.xpose.msra.mxu0 %v333
        %383 = vmatpush.bf16.xpose.msra.mxu0 %v331
        %384 = vmatpush.bf16.xpose.msra.mxu0 %v329
        %385 = vmatpush.bf16.xpose.msra.mxu0 %v327
        %386 = vmatpush.bf16.xpose.msra.mxu0 %v325
        %387 = vmatpush.bf16.xpose.msra.mxu0 %v323
        %388 = vmatpush.bf16.xpose.msra.mxu0 %v321
        %389 = vmatmul.bf16.gmra.mxu0 %v257
        %v390 = vpop.f32.mrf.mxu0
        %v391 = vadd.f32 %v362, %v390
        %v392 = vpop.f32.mrf.mxu0
        %v393 = vadd.f32 %v364, %v392
        %394 = vmatmul.bf16.gmra.mxu0 %v259
        %v395 = vpop.f32.mrf.mxu0
        %v396 = vadd.f32 %v367, %v395
        %v397 = vpop.f32.mrf.mxu0
        %v398 = vadd.f32 %v369, %v397
        %399 = vmatmul.bf16.gmra.mxu0 %v261
        %v400 = vpop.f32.mrf.mxu0
        %v401 = vadd.f32 %v372, %v400
        %v402 = vpop.f32.mrf.mxu0
        %v403 = vadd.f32 %v374, %v402
        %404 = vmatmul.bf16.gmra.mxu0 %v263
        %v405 = vpop.f32.mrf.mxu0
        %v406 = vadd.f32 %v377, %v405
        %v407 = vpop.f32.mrf.mxu0
        %v408 = vadd.f32 %v379, %v407
        %409 = vdwg.mxu0
        %v410 = vmul.f32 %v391, 4.0
        %v411 = vmul.f32 %v393, 4.0
        %v412 = vmul.f32 %v396, 4.0
        %v413 = vmul.f32 %v398, 4.0
        %v414 = vmul.f32 %v401, 4.0
        %v415 = vmul.f32 %v403, 4.0
        %v416 = vmul.f32 %v406, 4.0
        %v417 = vmul.f32 %v408, 4.0
        %v418 = vadd.f32 %v410, -4.0
        %v419 = vadd.f32 %v411, -4.0
        %v420 = vadd.f32 %v412, -4.0
        %v421 = vadd.f32 %v413, -4.0
        %v422 = vadd.f32 %v414, -4.0
        %v423 = vadd.f32 %v415, -4.0
        %v424 = vadd.f32 %v416, -4.0
        %v425 = vadd.f32 %v417, -4.0
        %v426 = vmul.f32 %v418, 1.442695
        %v427 = vpow.pop %v426
        %v428 = vmul.f32 %v419, 1.442695
        %v429 = vpow.pop %v428
        %v430 = vmul.f32 %v420, 1.442695
        %v431 = vpow.pop %v430
        %v432 = vmul.f32 %v421, 1.442695
        %v433 = vpow.pop %v432
        %v434 = vmul.f32 %v422, 1.442695
        %v435 = vpow.pop %v434
        %v436 = vmul.f32 %v423, 1.442695
        %v437 = vpow.pop %v436
        %v438 = vmul.f32 %v424, 1.442695
        %v439 = vpow.pop %v438
        %v440 = vmul.f32 %v425, 1.442695
        %v441 = vpow.pop %v440
        %442 = vst [vmem:[%s204] sm:$0xff] %v427
        %443 = vst [vmem:[%s204 + $0x8] sm:$0xff] %v429
        %444 = vst [vmem:[%s204 + $0x10] sm:$0xff] %v431
        %445 = vst [vmem:[%s204 + $0x18] sm:$0xff] %v433
        %446 = vst [vmem:[%s204 + $0x20] sm:$0xff] %v435
        %447 = vst [vmem:[%s204 + $0x28] sm:$0xff] %v437
        %448 = vst [vmem:[%s204 + $0x30] sm:$0xff] %v439
        %449 = vst [vmem:[%s204 + $0x38] sm:$0xff] %v441
        %s450 = sand.u32 %s94, 1
        %s451 = scalar_lea.sflag [#allocation4], %s450
        %s452 = sand.u32 %s94, 1
        %s453 = smul.addr %s452, 64
        %s454 = scalar_lea.vmem [#allocation7], %s453
        // Predicated region
        $region37: #{tpu_custom_call.1} parent=27 // pred_check
          %p455 = pneg %p104
        $region38: #{tpu_custom_call.1} parent=27 // pred_check_branch
          %457 = sbr.rel (%p455) target = $region40
        $region39: #{tpu_custom_call.1} parent=27 // pred_region
          %s458 = smul.u32 8, %s24
          %460 = vsyncadd %s451, 0
          %s461 = sadd.s32 %s25, %s458
          %s462 = smul.addr %s461, 8
          %s463 = scalar_lea.hbm %s2, %s462
          %s464 = sshll.u32 %s454, 4
          %s465 = int_to_ptr.vmem [resolvable:$true] %s464
          %s466 = sshll.u32 %s463, 4
          %s467 = int_to_ptr.hbm [resolvable:$true] %s466
          %472 = dma.vmem_to_hbm [thread:$0]  %s465, 1024, %s467, %s451, 128, 128, 8
        $region40: #{tpu_custom_call.1} parent=27 // pred_fallthru
          _
      $region28: #{tpu_custom_call.1} parent=5 // pred_fallthru
        _
      %p473 = scmp.le.s32.totalorder 2, %s15
      // Predicated region
      $region41: #{tpu_custom_call.1} parent=5 // pred_check
        %p474 = pneg %p473
      $region42: #{tpu_custom_call.1} parent=5 // pred_check_branch
        %476 = sbr.rel (%p474) target = $region44
      $region43: #{tpu_custom_call.1} parent=5 // pred_region
        %s477 = ssub.s32 %s15, 2
        // Predicated region
        $region45: #{tpu_custom_call.1} parent=43 // pred_check
          %p478 = pneg %p110
        $region46: #{tpu_custom_call.1} parent=43 // pred_check_branch
          %480 = sbr.rel (%p478) target = $region48
        $region47: #{tpu_custom_call.1} parent=43 // pred_region
          %s481 = sand.u32 %s95, 1
          %s482 = scalar_lea.sflag [#allocation4], %s481
          %s483 = sand.u32 %s95, 1
          %s484 = smul.addr %s483, 64
          %s485 = scalar_lea.vmem [#allocation7], %s484
          %487 = dma.done %s482, 1024
        $region48: #{tpu_custom_call.1} parent=43 // pred_fallthru
          _
      $region44: #{tpu_custom_call.1} parent=5 // pred_fallthru
        _
    $region6: #{tpu_custom_call.1} parent=1 // loop_footer
      %s19 = sadd.s32 1, %s15
    $region7: #{tpu_custom_call.1} parent=1 // loop_footer_branch
      %14 = sbr.rel target = $region3
    $region8: #{tpu_custom_call.1} parent=1 // loop_exit
      _
    %488 = vsyncpa [#allocation3], 1
    %s489 = scalar_lea.sflag [#allocation3], 1
    %490 = vsyncpa %s489, 1
    %491 = vsyncpa [#allocation6], 1
    %492 = vsyncpa [#allocation4], 1
    %s493 = scalar_lea.sflag [#allocation4], 1
    %494 = vsyncpa %s493, 1

</llo_original>
